<compile_context>
chip_gen: v7x
topology: tpu7x:2x2x1
jax: 0.10.0
libtpu: 0.0.40
codegen_flags: <defaults>
</compile_context>

<pallas_src>
import jax
import jax.numpy as jnp
from jax.experimental import pallas as pl
from jax.experimental.pallas import tpu as pltpu

_SMALL_INPUT_BYTES = 1 << 20           # below this, one gridless full-array block
_LANE_CANDIDATES = (8192, 4096, 2048, 1024, 512, 256, 128)
_MAX_EDGE_BLOCK_BYTES = 8 << 20        # cap on the minimal (sub, last_dim) block
_SUBLANE_ALIGN = {4: 8, 2: 16, 1: 32}  # itemsize -> min second-minor alignment


def _square_kernel(x_ref, o_ref):
    x = x_ref[...]
    o_ref[...] = x * x                 # torch.pow(x, 2)


def _chip_profile():
    """Per-generation tuning: (block target bytes, min grid steps, vmem limit)."""
    try:
        kind = jax.devices()[0].device_kind.lower()
    except Exception:
        kind = ""
    if "v7" in kind:
        # 2 TensorCores, 64 MiB VMEM, ~3.2 TB/s: big blocks, >=4 grid steps so
        # each core keeps an i+1 prefetch in flight.  8 MiB x (in+out) x 2 = 32 MiB.
        return 8 << 20, 4, 48 << 20
    if "v6" in kind:
        # 1 TC, 128 MiB VMEM (32 MiB default scoped): 4 MiB blocks, no forced split.
        return 4 << 20, 1, 32 << 20
    if "v5" in kind:
        # v5e: 1 TC, 16 MiB default scoped VMEM: 2 MiB blocks.
        return 2 << 20, 1, 16 << 20
    return 2 << 20, 1, None            # unknown chip: conservative defaults


def _pick_lane_width(n, min_rows=1):
    """Widest lane-dense width (multiple of 128) that exactly divides n."""
    for cand in _LANE_CANDIDATES:
        if n % cand == 0 and n // cand >= min_rows:
            return cand
    return None


def custom_activation(x):
    """Elementwise x**2 via a Pallas TPU kernel. Preserves shape and dtype."""
    shape, dtype = x.shape, x.dtype
    n = x.size
    if n == 0:
        return x
    itemsize = jnp.dtype(dtype).itemsize
    nbytes = n * itemsize
    sub = _SUBLANE_ALIGN.get(itemsize, 8)

    # ---- Small-input fast path: one gridless full-array block. --------------
    if nbytes <= _SMALL_INPUT_BYTES:
        lane_w = _pick_lane_width(n, min_rows=sub) or _pick_lane_width(n)
        if lane_w is not None:
            x2d = x.reshape(n // lane_w, lane_w)      # sublane + lane dense view
        elif len(shape) >= 2:
            x2d = x.reshape(-1, shape[-1])            # natural 2-D collapse
        else:
            x2d = x.reshape(1, n)
        out = pl.pallas_call(
            _square_kernel,
            out_shape=jax.ShapeDtypeStruct(x2d.shape, dtype),
            cost_estimate=pl.CostEstimate(
                flops=n, transcendentals=0, bytes_accessed=2 * nbytes),
        )(x2d)
        return out.reshape(shape)

    block_target, min_steps, vmem_limit = _chip_profile()

    # ---- Pick a 2-D slab view (no padding, no extra HBM passes). ------------
    lane_w = _pick_lane_width(n)
    if lane_w is not None:
        x2d = x.reshape(n // lane_w, lane_w)          # lane-dense, unmasked stores
    elif len(shape) >= 2 and shape[-1] * sub * itemsize <= _MAX_EDGE_BLOCK_BYTES:
        lane_w = shape[-1]                            # full-extent lane dim
        x2d = x.reshape(-1, lane_w)
    else:
        # Rare fallback (e.g. 1-D prime-ish length): tile the lane dimension of
        # a (1, n) view; the partial last block is masked by Pallas.
        lane_block = max(128, (block_target // (8 * itemsize)) // 128 * 128)
        grid = (pl.cdiv(n, lane_block),)
        out2d = pl.pallas_call(
            _square_kernel,
            out_shape=jax.ShapeDtypeStruct((1, n), dtype),
            grid_spec=pltpu.PrefetchScalarGridSpec(
                num_scalar_prefetch=0,
                grid=grid,
                in_specs=[pl.BlockSpec((1, lane_block), lambda i: (0, i))],
                out_specs=pl.BlockSpec((1, lane_block), lambda i: (0, i)),
            ),
            compiler_params=pltpu.CompilerParams(
                dimension_semantics=("parallel",),
                vmem_limit_bytes=vmem_limit),
            cost_estimate=pl.CostEstimate(
                flops=n, transcendentals=0, bytes_accessed=2 * nbytes),
        )(x.reshape(1, n))
        return out2d.reshape(shape)

    rows = x2d.shape[0]

    # ---- Tile rows: big blocks, cdiv grid, masked partial edge block. -------
    tile_rows = max(sub, (block_target // (lane_w * itemsize)) // sub * sub)
    if min_steps > 1 and rows >= sub * min_steps:
        # 2-TC chips: keep >= min_steps blocks so both cores double-buffer.
        per_step = max(sub, (pl.cdiv(rows, min_steps) // sub) * sub)
        tile_rows = min(tile_rows, per_step)
    if tile_rows >= rows:
        tile_rows = rows                              # single full-extent block
    grid = (pl.cdiv(rows, tile_rows),)

    block_bytes = tile_rows * lane_w * itemsize
    needed = 4 * block_bytes + (4 << 20)              # in+out, double-buffered
    if vmem_limit is None or vmem_limit < needed:
        vmem_limit = min(needed, 48 << 20)

    out2d = pl.pallas_call(
        _square_kernel,
        out_shape=jax.ShapeDtypeStruct(x2d.shape, dtype),
        grid_spec=pltpu.PrefetchScalarGridSpec(
            num_scalar_prefetch=0,
            grid=grid,
            in_specs=[pl.BlockSpec((tile_rows, lane_w), lambda i: (i, 0))],
            out_specs=pl.BlockSpec((tile_rows, lane_w), lambda i: (i, 0)),
        ),
        compiler_params=pltpu.CompilerParams(
            dimension_semantics=("parallel",),
            vmem_limit_bytes=vmem_limit),
        cost_estimate=pl.CostEstimate(
            flops=n, transcendentals=0, bytes_accessed=2 * nbytes),
    )(x2d)
    return out2d.reshape(shape)


if __name__ == "__main__":
    key = jax.random.PRNGKey(0)
    k1, k2, k3, k4 = jax.random.split(key, 4)

    # 1) Module-sized NCHW input (small gridless path).
    x_small = jax.random.normal(k1, (2, 4, 16, 16), dtype=jnp.float32)
    out_small = jax.block_until_ready(custom_activation(x_small))
    assert out_small.shape == x_small.shape and out_small.dtype == x_small.dtype
    assert jnp.allclose(out_small, x_small * x_small, atol=1e-6, rtol=1e-6)

    # 2) Larger activation (tiled lane-dense path, cdiv grid).
    x_big = jax.random.normal(k2, (2, 4, 128, 512), dtype=jnp.float32)
    out_big = jax.block_until_ready(custom_activation(x_big))
    assert out_big.shape == x_big.shape and out_big.dtype == x_big.dtype
    assert jnp.allclose(out_big, x_big * x_big, atol=1e-6, rtol=1e-6)

    # 3) Odd shape: natural-collapse slab + masked partial edge block, no pad.
    x_odd = jax.random.normal(k3, (3, 7, 191, 193), dtype=jnp.float32)
    out_odd = jax.block_until_ready(custom_activation(x_odd))
    assert out_odd.shape == x_odd.shape and out_odd.dtype == x_odd.dtype
    assert jnp.allclose(out_odd, x_odd * x_odd, atol=1e-6, rtol=1e-6)

    # 4) bf16 input (exercises dtype-dependent sublane alignment).
    x_bf16 = jax.random.normal(k4, (4, 8, 128, 256), dtype=jnp.bfloat16)
    out_bf16 = jax.block_until_ready(custom_activation(x_bf16))
    assert out_bf16.shape == x_bf16.shape and out_bf16.dtype == x_bf16.dtype
    assert jnp.allclose(out_bf16.astype(jnp.float32),
                        (x_bf16 * x_bf16).astype(jnp.float32),
                        atol=1e-2, rtol=1e-2)

    print("KERNEL_OK")
</pallas_src>

<mosaic_0001>
module attributes {stable_mosaic.version = 11 : i64} {
  func.func @_square_kernel(%arg0: memref<8x256xf32, #tpu.memory_space<vmem>>, %arg1: memref<8x256xf32, #tpu.memory_space<vmem>>) attributes {dimension_semantics = [], scalar_prefetch = 0 : i64, scratch_operands = 0 : i64, tpu.core_type = #tpu.core_type<tc>} {
    %c0 = arith.constant 0 : index
    %c0_0 = arith.constant 0 : index
    %0 = vector.load %arg0[%c0, %c0_0] : memref<8x256xf32, #tpu.memory_space<vmem>>, vector<8x256xf32>
    %1 = arith.mulf %0, %0 : vector<8x256xf32>
    %c0_1 = arith.constant 0 : index
    %c0_2 = arith.constant 0 : index
    %2 = vector.load %arg1[%c0_1, %c0_2] : memref<8x256xf32, #tpu.memory_space<vmem>>, vector<8x256xf32>
    tpu.vector_store %arg1[%c0_1, %c0_2], %1 {strides = array<i32>} : memref<8x256xf32, #tpu.memory_space<vmem>>, vector<8x256xf32>,
    return
  }
}

</mosaic_0001>

<llo_original>
// kernel: tpu_custom_call.1
$region0: #{tpu_custom_call.1}
  #allocation0 [shape = 'u32[]', space=smem, size = 0x4, offset = 0x4, fixed_abs, tag = 'smem constant byte address 0x4 - core index']
  #allocation1 [shape = 'u32[144,128]{1,0:T(1,128)}', space=vmem, size = 0x12000, scoped, tag = 'internal scratch']
  %s0 = inlined_call_operand.hbm [shape: f32[8,256], index: 0, kind: input, shape index: {}]
  %s1 = inlined_call_operand.hbm [shape: f32[8,256], index: 1, kind: output, shape index: {}]
  %s2 = sld [smem:[#allocation0]]
  $region18: #{tpu_custom_call.1} parent=0
    _
  %s4 = ssub.s32 1, %s2
  %s5 = scalar_select 0, %s4, %s2
  $region1: #{tpu_custom_call.1} parent=0
    #allocation2 [shape = 'u8[8192]{0}', space=vmem, size = 0x2000, scoped, tag = 'input window, operand 0, single buffered']
    #allocation3 [shape = 's32[1]{0}', space=sflag, size = 0x4, scoped, tag = 'scoped memory for tpu_custom_call.1']
    #allocation4 [shape = 's32[1]{0}', space=sflag, size = 0x4, scoped, tag = 'scoped memory for tpu_custom_call.1']
    #allocation5 [shape = 'u8[8192]{0}', space=vmem, size = 0x2000, scoped, tag = 'output window, operand 0, single buffered']
    %6 = vsyncpa [#allocation3], 0
    %7 = vsyncpa [#allocation4], 0
    // Predicated region
    $region2: #{tpu_custom_call.1} parent=1 // pred_check
      _
    $region3: #{tpu_custom_call.1} parent=1 // pred_check_branch
      %9 = sbr.rel (0) target = $region5
    $region4: #{tpu_custom_call.1} parent=1 // pred_region
      %s11 = ssub.s32 256, 256
      %12 = vsyncadd [#allocation3], %s11
      %s14 = sshll.u32 [#allocation2], 4
      %s15 = int_to_ptr.vmem [resolvable:$true] %s14
      %17 = dma.hbm_to_vmem [thread:$0]  %s0, 256, %s15, [#allocation3]
    $region5: #{tpu_custom_call.1} parent=1 // pred_fallthru
      _
    // Predicated region
    $region6: #{tpu_custom_call.1} parent=1 // pred_check
      _
    $region7: #{tpu_custom_call.1} parent=1 // pred_check_branch
      %19 = sbr.rel (0) target = $region9
    $region8: #{tpu_custom_call.1} parent=1 // pred_region
      %20 = dma.done [#allocation3], 256
    $region9: #{tpu_custom_call.1} parent=1 // pred_fallthru
      _
    %v21 = vld [vmem:[#allocation2] sm:$0xff]
    %v22 = vld [vmem:[#allocation2 + $0x8] sm:$0xff]
    %v23 = vmul.f32 %v21, %v21
    %v24 = vmul.f32 %v22, %v22
    %25 = vst [vmem:[#allocation5] sm:$0xff] %v23
    %26 = vst [vmem:[#allocation5 + $0x8] sm:$0xff] %v24
    // Predicated region
    $region10: #{tpu_custom_call.1} parent=1 // pred_check
      _
    $region11: #{tpu_custom_call.1} parent=1 // pred_check_branch
      %28 = sbr.rel (0) target = $region13
    $region12: #{tpu_custom_call.1} parent=1 // pred_region
      %s30 = ssub.s32 256, 256
      %31 = vsyncadd [#allocation4], %s30
      %s33 = sshll.u32 [#allocation5], 4
      %s34 = int_to_ptr.vmem [resolvable:$true] %s33
      %36 = dma.vmem_to_hbm [thread:$0]  %s34, 256, %s1, [#allocation4]
    $region13: #{tpu_custom_call.1} parent=1 // pred_fallthru
      _
    // Predicated region
    $region14: #{tpu_custom_call.1} parent=1 // pred_check
      _
    $region15: #{tpu_custom_call.1} parent=1 // pred_check_branch
      %38 = sbr.rel (0) target = $region17
    $region16: #{tpu_custom_call.1} parent=1 // pred_region
      %39 = dma.done [#allocation4], 256
    $region17: #{tpu_custom_call.1} parent=1 // pred_fallthru
      _
    %40 = vsyncpa [#allocation3], 1
    %41 = vsyncpa [#allocation4], 1

</llo_original>
